<compile_context>
chip_gen: v5e
topology: v5e:2x2
jax: 0.10.0
libtpu: 0.0.40
codegen_flags: <defaults>
</compile_context>

<pallas_src>
import jax
import jax.numpy as jnp
from jax.experimental import pallas as pl
from jax.experimental.pallas import tpu as pltpu


def _policy_loss_kernel(state_ref, w1_ref, b1_ref, w2_ref, b2_ref,
                        action_ref, adv_ref, ep_ref, loss_ref):
    # hidden = relu(state @ W1 + b1)
    h = jnp.dot(state_ref[...], w1_ref[...],
                preferred_element_type=jnp.float32) + b1_ref[...]
    h = jnp.maximum(h, 0.0)

    # logits = hidden @ W2 + b2
    logits = jnp.dot(h, w2_ref[...],
                     preferred_element_type=jnp.float32) + b2_ref[...]   # (bz, A)

    # log-softmax along dim=1 (actions): logp = logits - logsumexp(logits)
    m = jnp.max(logits, axis=1, keepdims=True)                           # (bz, 1)
    lse = m + jnp.log(jnp.sum(jnp.exp(logits - m), axis=1, keepdims=True))
    logp_all = logits - lse                                              # (bz, A)

    # in-kernel one-hot gather: iota over the action lane vs. chosen action
    act_ids = jax.lax.broadcasted_iota(jnp.int32, logp_all.shape, 1)     # (bz, A)
    mask = (act_ids == action_ref[...]).astype(jnp.float32)              # (bz, A)

    logp = jnp.sum(logp_all * mask, axis=1, keepdims=True)               # (bz, 1)
    p = jnp.exp(logp)                                                    # (bz, 1)

    loss = jnp.sum(-logp * adv_ref[...])
    # entropy on the *gathered* probs only, as in the PyTorch source:
    #   loss += -( -(p*log p).sum() ) * ep  ==  sum(p*logp) * ep
    loss = loss + jnp.sum(p * logp) * ep_ref[0, 0]

    loss_ref[0, 0] = loss


def policy_net_loss(state, action, advantage, params, entropy_penalty):
    """state: (bz, STATE_DIM) f32, action: (bz,) int, advantage: (bz,) f32."""
    w1, b1, w2, b2 = params
    bz, state_dim = state.shape
    hidden_dim = w1.shape[1]
    n_action = w2.shape[1]

    action_2d = action.reshape(bz, 1).astype(jnp.int32)
    adv_2d = advantage.reshape(bz, 1).astype(jnp.float32)
    b1_2d = b1.reshape(1, hidden_dim)
    b2_2d = b2.reshape(1, n_action)
    ep_val = 0.0 if entropy_penalty is None else float(entropy_penalty)
    ep = jnp.full((1, 1), ep_val, dtype=jnp.float32)

    vmem = lambda: pl.BlockSpec(memory_space=pltpu.MemorySpace.VMEM)
    smem = lambda: pl.BlockSpec(memory_space=pltpu.MemorySpace.SMEM)

    cost = pl.CostEstimate(
        flops=2 * bz * state_dim * hidden_dim + 2 * bz * hidden_dim * n_action,
        transcendentals=bz * n_action + 3 * bz,       # exp(lse), log, exp, ...
        bytes_accessed=4 * (bz * state_dim + state_dim * hidden_dim + hidden_dim
                            + hidden_dim * n_action + n_action + 2 * bz + 1) + 4,
    )

    loss = pl.pallas_call(
        _policy_loss_kernel,
        out_shape=jax.ShapeDtypeStruct((1, 1), jnp.float32),
        in_specs=[vmem(),   # state
                  vmem(),   # w1
                  vmem(),   # b1
                  vmem(),   # w2
                  vmem(),   # b2
                  vmem(),   # action (bz, 1) int32
                  vmem(),   # advantage (bz, 1) f32
                  smem()],  # entropy penalty scalar
        out_specs=smem(),
        cost_estimate=cost,
    )(state.astype(jnp.float32), w1, b1_2d, w2, b2_2d, action_2d, adv_2d, ep)
    return loss[0, 0]


def init_params(key, state_dim, hidden_dim, n_action):
    """Deterministic init mimicking nn.Linear's U(-1/sqrt(fan_in), 1/sqrt(fan_in)).

    Weights are stored as (in, out) = transpose of PyTorch's (out, in).
    """
    k1, k2, k3, k4 = jax.random.split(key, 4)
    bnd1 = 1.0 / jnp.sqrt(state_dim)
    bnd2 = 1.0 / jnp.sqrt(hidden_dim)
    w1 = jax.random.uniform(k1, (state_dim, hidden_dim), jnp.float32, -bnd1, bnd1)
    b1 = jax.random.uniform(k2, (hidden_dim,), jnp.float32, -bnd1, bnd1)
    w2 = jax.random.uniform(k3, (hidden_dim, n_action), jnp.float32, -bnd2, bnd2)
    b2 = jax.random.uniform(k4, (n_action,), jnp.float32, -bnd2, bnd2)
    return w1, b1, w2, b2


def _reference_loss(state, action, advantage, params, entropy_penalty):
    w1, b1, w2, b2 = params
    h = jnp.maximum(state @ w1 + b1, 0.0)
    prob = jax.nn.softmax(h @ w2 + b2, axis=1)
    p = jnp.take_along_axis(prob, action[:, None], axis=1)[:, 0]
    logp = jnp.log(p)
    loss = jnp.sum(-logp * advantage)
    if entropy_penalty is not None:
        loss = loss + jnp.sum(p * logp) * entropy_penalty
    return loss


if __name__ == "__main__":
    STATE_DIM = 16
    N_ACTION = 4
    HIDDEN_DIM = 32
    BZ = 8
    ENTROPY_PENALTY = 0.01

    key = jax.random.PRNGKey(0)
    kp, ks, ka, kv = jax.random.split(key, 4)

    params = init_params(kp, STATE_DIM, HIDDEN_DIM, N_ACTION)
    state = jax.random.normal(ks, (BZ, STATE_DIM), jnp.float32)
    action = jax.random.randint(ka, (BZ,), 0, N_ACTION, jnp.int32)
    advantage = jax.random.normal(kv, (BZ,), jnp.float32)

    loss_fn = jax.jit(
        lambda s, a, adv: policy_net_loss(s, a, adv, params, ENTROPY_PENALTY))
    loss = jax.block_until_ready(loss_fn(state, action, advantage))

    ref = _reference_loss(state, action, advantage, params, ENTROPY_PENALTY)
    assert jnp.allclose(loss, ref, rtol=1e-5, atol=1e-5), (loss, ref)

    # Also exercise the entropy_penalty=None path (same compiled kernel shape).
    loss_noent = jax.block_until_ready(
        policy_net_loss(state, action, advantage, params, None))
    ref_noent = _reference_loss(state, action, advantage, params, None)
    assert jnp.allclose(loss_noent, ref_noent, rtol=1e-5, atol=1e-5), (
        loss_noent, ref_noent)

    print("KERNEL_OK")
</pallas_src>

<mosaic_0001>
module attributes {stable_mosaic.version = 11 : i64} {
  func.func @_policy_loss_kernel(%arg0: memref<8x16xf32, #tpu.memory_space<vmem>>, %arg1: memref<16x32xf32, #tpu.memory_space<vmem>>, %arg2: memref<1x32xf32, #tpu.memory_space<vmem>>, %arg3: memref<32x4xf32, #tpu.memory_space<vmem>>, %arg4: memref<1x4xf32, #tpu.memory_space<vmem>>, %arg5: memref<8x1xi32, #tpu.memory_space<vmem>>, %arg6: memref<8x1xf32, #tpu.memory_space<vmem>>, %arg7: memref<1x1xf32, #tpu.memory_space<smem>>, %arg8: memref<1x1xf32, #tpu.memory_space<smem>>) attributes {dimension_semantics = [], scalar_prefetch = 0 : i64, scratch_operands = 0 : i64, tpu.core_type = #tpu.core_type<tc>} {
    %c0 = arith.constant 0 : index
    %c0_0 = arith.constant 0 : index
    %0 = vector.load %arg0[%c0, %c0_0] : memref<8x16xf32, #tpu.memory_space<vmem>>, vector<8x16xf32>
    %c0_1 = arith.constant 0 : index
    %c0_2 = arith.constant 0 : index
    %1 = vector.load %arg1[%c0_1, %c0_2] : memref<16x32xf32, #tpu.memory_space<vmem>>, vector<16x32xf32>
    %cst = arith.constant dense<0.000000e+00> : vector<8x32xf32>
    %2 = tpu.matmul %0, %1, %cst {dimension_numbers = #tpu.dot_dimension_numbers<[1], [0], [0], [1], [0, 0, 1, 1], [], []>} : vector<8x16xf32>, vector<16x32xf32>, vector<8x32xf32> -> vector<8x32xf32>
    %c0_3 = arith.constant 0 : index
    %c0_4 = arith.constant 0 : index
    %3 = vector.load %arg2[%c0_3, %c0_4] : memref<1x32xf32, #tpu.memory_space<vmem>>, vector<1x32xf32>
    %4 = vector.broadcast %3 : vector<1x32xf32> to vector<8x32xf32>
    %5 = arith.addf %2, %4 : vector<8x32xf32>
    %cst_5 = arith.constant 0.000000e+00 : f32
    %6 = vector.broadcast %cst_5 : f32 to vector<8x32xf32>
    %7 = arith.maximumf %5, %6 : vector<8x32xf32>
    %c0_6 = arith.constant 0 : index
    %c0_7 = arith.constant 0 : index
    %8 = vector.load %arg3[%c0_6, %c0_7] : memref<32x4xf32, #tpu.memory_space<vmem>>, vector<32x4xf32>
    %cst_8 = arith.constant dense<0.000000e+00> : vector<8x4xf32>
    %9 = tpu.matmul %7, %8, %cst_8 {dimension_numbers = #tpu.dot_dimension_numbers<[1], [0], [0], [1], [0, 0, 1, 1], [], []>} : vector<8x32xf32>, vector<32x4xf32>, vector<8x4xf32> -> vector<8x4xf32>
    %c0_9 = arith.constant 0 : index
    %c0_10 = arith.constant 0 : index
    %10 = vector.load %arg4[%c0_9, %c0_10] : memref<1x4xf32, #tpu.memory_space<vmem>>, vector<1x4xf32>
    %11 = vector.broadcast %10 : vector<1x4xf32> to vector<8x4xf32>
    %12 = arith.addf %9, %11 : vector<8x4xf32>
    %cst_11 = arith.constant dense<0xFF800000> : vector<8xf32>
    %13 = vector.multi_reduction <maximumf>, %12, %cst_11 [1] : vector<8x4xf32> to vector<8xf32>
    %14 = vector.shape_cast %13 : vector<8xf32> to vector<8x1xf32>
    %15 = vector.broadcast %14 : vector<8x1xf32> to vector<8x4xf32>
    %16 = arith.subf %12, %15 : vector<8x4xf32>
    %17 = math.exp %16 : vector<8x4xf32>
    %cst_12 = arith.constant dense<0.000000e+00> : vector<8xf32>
    %18 = vector.multi_reduction <add>, %17, %cst_12 [1] : vector<8x4xf32> to vector<8xf32>
    %19 = vector.shape_cast %18 : vector<8xf32> to vector<8x1xf32>
    %20 = math.log %19 : vector<8x1xf32>
    %21 = arith.addf %14, %20 : vector<8x1xf32>
    %22 = vector.broadcast %21 : vector<8x1xf32> to vector<8x4xf32>
    %23 = arith.subf %12, %22 : vector<8x4xf32>
    %24 = tpu.iota {dimensions = array<i32: 1>} : vector<8x4xi32>
    %c0_13 = arith.constant 0 : index
    %c0_14 = arith.constant 0 : index
    %25 = vector.load %arg5[%c0_13, %c0_14] : memref<8x1xi32, #tpu.memory_space<vmem>>, vector<8x1xi32>
    %26 = vector.broadcast %25 : vector<8x1xi32> to vector<8x4xi32>
    %27 = arith.cmpi eq, %24, %26 : vector<8x4xi32>
    %28 = arith.extui %27 : vector<8x4xi1> to vector<8x4xi32>
    %29 = arith.sitofp %28 : vector<8x4xi32> to vector<8x4xf32>
    %30 = arith.mulf %23, %29 : vector<8x4xf32>
    %cst_15 = arith.constant dense<0.000000e+00> : vector<8xf32>
    %31 = vector.multi_reduction <add>, %30, %cst_15 [1] : vector<8x4xf32> to vector<8xf32>
    %32 = vector.shape_cast %31 : vector<8xf32> to vector<8x1xf32>
    %33 = math.exp %32 : vector<8x1xf32>
    %cst_16 = arith.constant 0.000000e+00 : f32
    %34 = vector.broadcast %cst_16 : f32 to vector<8x1xf32>
    %35 = arith.subf %34, %32 : vector<8x1xf32>
    %c0_17 = arith.constant 0 : index
    %c0_18 = arith.constant 0 : index
    %36 = vector.load %arg6[%c0_17, %c0_18] : memref<8x1xf32, #tpu.memory_space<vmem>>, vector<8x1xf32>
    %37 = arith.mulf %35, %36 : vector<8x1xf32>
    %38 = vector.shape_cast %37 : vector<8x1xf32> to vector<1x8x1xf32>
    %cst_19 = arith.constant dense<0.000000e+00> : vector<1xf32>
    %39 = vector.multi_reduction <add>, %38, %cst_19 [1, 2] : vector<1x8x1xf32> to vector<1xf32>
    %40 = vector.shape_cast %39 : vector<1xf32> to vector<1x1x1xf32>
    %41 = vector.extract %40[0, 0, 0] : f32 from vector<1x1x1xf32>
    %42 = arith.mulf %33, %32 : vector<8x1xf32>
    %43 = vector.shape_cast %42 : vector<8x1xf32> to vector<1x8x1xf32>
    %cst_20 = arith.constant dense<0.000000e+00> : vector<1xf32>
    %44 = vector.multi_reduction <add>, %43, %cst_20 [1, 2] : vector<1x8x1xf32> to vector<1xf32>
    %45 = vector.shape_cast %44 : vector<1xf32> to vector<1x1x1xf32>
    %46 = vector.extract %45[0, 0, 0] : f32 from vector<1x1x1xf32>
    %c0_21 = arith.constant 0 : index
    %c0_22 = arith.constant 0 : index
    %47 = memref.load %arg7[%c0_21, %c0_22] : memref<1x1xf32, #tpu.memory_space<smem>>
    %48 = arith.mulf %46, %47 : f32
    %49 = arith.addf %41, %48 : f32
    %c0_23 = arith.constant 0 : index
    %c0_24 = arith.constant 0 : index
    %50 = memref.load %arg8[%c0_23, %c0_24] : memref<1x1xf32, #tpu.memory_space<smem>>
    memref.store %49, %arg8[%c0_23, %c0_24] : memref<1x1xf32, #tpu.memory_space<smem>>
    return
  }
}

</mosaic_0001>

<llo_original>
// kernel: _lambda_.1
$region0: #{_lambda_.1}
  #allocation0 [shape = 'u32[]', space=smem, size = 0x4, offset = 0x4, fixed_abs, tag = 'smem constant byte address 0x4 - core index']
  #allocation1 [shape = 'u32[72,128]{1,0:T(1,128)}', space=vmem, size = 0x9000, scoped, tag = 'internal scratch']
  #allocation2 [shape = 'f32[1,1]{1,0:T(1,128)S(6)}', space=smem, size = 0x200, scoped, tag = 'scoped memory for _lambda_.1']
  %s0 = inlined_call_operand.vmem [shape: f32[8,16], index: 0, kind: input, shape index: {}]
  %s1 = inlined_call_operand.vmem [shape: f32[16,32], index: 1, kind: input, shape index: {}]
  %s2 = inlined_call_operand.hbm [shape: f32[1,32], index: 2, kind: input, shape index: {}]
  %s3 = inlined_call_operand.hbm [shape: f32[32,4], index: 3, kind: input, shape index: {}]
  %s4 = inlined_call_operand.hbm [shape: f32[1,4], index: 4, kind: input, shape index: {}]
  %s5 = inlined_call_operand.vmem [shape: s32[8,1], index: 5, kind: input, shape index: {}]
  %s6 = inlined_call_operand.vmem [shape: f32[8,1], index: 6, kind: input, shape index: {}]
  %s7 = inlined_call_operand.<no memory space> [shape: f32[1,1], index: 7, kind: input, shape index: {}]
  %s8 = inlined_call_operand.hbm [shape: f32[1,1], index: 8, kind: output, shape index: {}]
  %s9 = sld [smem:[#allocation0]]
  $region54: #{_lambda_.1} parent=0
    _
  %s11 = ssub.s32 1, %s9
  %s12 = scalar_select 0, %s11, %s9
  %13 = sst [smem:[#allocation2]] %s7
  $region1: #{_lambda_.1} parent=0
    #allocation3 [shape = 'u8[512]{0}', space=vmem, size = 0x400, scoped, tag = 'input window, operand 2, single buffered']
    #allocation4 [shape = 's32[1]{0}', space=sflag, size = 0x4, scoped, tag = 'scoped memory for _lambda_.1']
    #allocation5 [shape = 's32[1]{0}', space=sflag, size = 0x4, scoped, tag = 'scoped memory for _lambda_.1']
    #allocation6 [shape = 'u8[16384]{0}', space=vmem, size = 0x4000, scoped, tag = 'input window, operand 3, single buffered']
    #allocation7 [shape = 's32[1]{0}', space=sflag, size = 0x4, scoped, tag = 'scoped memory for _lambda_.1']
    #allocation8 [shape = 'u8[512]{0}', space=vmem, size = 0x400, scoped, tag = 'input window, operand 4, single buffered']
    #allocation9 [shape = 'u8[512]{0}', space=smem, size = 0x200, scoped, tag = 'output window, operand 0, single buffered']
    %14 = vsyncpa [#allocation4], 0
    %15 = vsyncpa [#allocation7], 0
    %16 = vsyncpa [#allocation5], 0
    // Predicated region
    $region2: #{_lambda_.1} parent=1 // pred_check
      _
    $region3: #{_lambda_.1} parent=1 // pred_check_branch
      %18 = sbr.rel (0) target = $region5
    $region4: #{_lambda_.1} parent=1 // pred_region
      _
    $region5: #{_lambda_.1} parent=1 // pred_fallthru
      _
    // Predicated region
    $region6: #{_lambda_.1} parent=1 // pred_check
      _
    $region7: #{_lambda_.1} parent=1 // pred_check_branch
      %20 = sbr.rel (0) target = $region9
    $region8: #{_lambda_.1} parent=1 // pred_region
      _
    $region9: #{_lambda_.1} parent=1 // pred_fallthru
      _
    // Predicated region
    $region10: #{_lambda_.1} parent=1 // pred_check
      _
    $region11: #{_lambda_.1} parent=1 // pred_check_branch
      %22 = sbr.rel (0) target = $region13
    $region12: #{_lambda_.1} parent=1 // pred_region
      %24 = vsyncadd [#allocation4], 0
      %s26 = sshll.u32 %s2, 4
      %s27 = int_to_ptr.hbm [resolvable:$true] %s26
      %s28 = sshll.u32 [#allocation3], 4
      %s29 = int_to_ptr.vmem [resolvable:$true] %s28
      %31 = dma.hbm_to_vmem [thread:$0]  %s27, 16, %s29, [#allocation4]
    $region13: #{_lambda_.1} parent=1 // pred_fallthru
      _
    // Predicated region
    $region14: #{_lambda_.1} parent=1 // pred_check
      _
    $region15: #{_lambda_.1} parent=1 // pred_check_branch
      %33 = sbr.rel (0) target = $region17
    $region16: #{_lambda_.1} parent=1 // pred_region
      %35 = vsyncadd [#allocation7], 0
      %s36 = sshll.u32 %s3, 4
      %s37 = int_to_ptr.hbm [resolvable:$true] %s36
      %s38 = sshll.u32 [#allocation6], 4
      %s39 = int_to_ptr.vmem [resolvable:$true] %s38
      %44 = dma.hbm_to_vmem [thread:$0]  %s37, 512, %s39, [#allocation7], 128, 128, 8
    $region17: #{_lambda_.1} parent=1 // pred_fallthru
      _
    // Predicated region
    $region18: #{_lambda_.1} parent=1 // pred_check
      _
    $region19: #{_lambda_.1} parent=1 // pred_check_branch
      %46 = sbr.rel (0) target = $region21
    $region20: #{_lambda_.1} parent=1 // pred_region
      %48 = vsyncadd [#allocation7], 0
      %s50 = sshll.u32 %s4, 4
      %s51 = int_to_ptr.hbm [resolvable:$true] %s50
      %s52 = sshll.u32 [#allocation8], 4
      %s53 = int_to_ptr.vmem [resolvable:$true] %s52
      %55 = dma.hbm_to_vmem [thread:$0]  %s51, 16, %s53, [#allocation7]
    $region21: #{_lambda_.1} parent=1 // pred_fallthru
      _
    // Predicated region
    $region22: #{_lambda_.1} parent=1 // pred_check
      _
    $region23: #{_lambda_.1} parent=1 // pred_check_branch
      %57 = sbr.rel (0) target = $region25
    $region24: #{_lambda_.1} parent=1 // pred_region
      _
    $region25: #{_lambda_.1} parent=1 // pred_fallthru
      _
    // Predicated region
    $region26: #{_lambda_.1} parent=1 // pred_check
      _
    $region27: #{_lambda_.1} parent=1 // pred_check_branch
      %59 = sbr.rel (0) target = $region29
    $region28: #{_lambda_.1} parent=1 // pred_region
      _
    $region29: #{_lambda_.1} parent=1 // pred_fallthru
      _
    // Predicated region
    $region30: #{_lambda_.1} parent=1 // pred_check
      _
    $region31: #{_lambda_.1} parent=1 // pred_check_branch
      %61 = sbr.rel (0) target = $region33
    $region32: #{_lambda_.1} parent=1 // pred_region
      _
    $region33: #{_lambda_.1} parent=1 // pred_fallthru
      _
    // Predicated region
    $region34: #{_lambda_.1} parent=1 // pred_check
      _
    $region35: #{_lambda_.1} parent=1 // pred_check_branch
      %63 = sbr.rel (0) target = $region37
    $region36: #{_lambda_.1} parent=1 // pred_region
      %65 = dma.done [#allocation4], 16
    $region37: #{_lambda_.1} parent=1 // pred_fallthru
      _
    // Predicated region
    $region38: #{_lambda_.1} parent=1 // pred_check
      _
    $region39: #{_lambda_.1} parent=1 // pred_check_branch
      %67 = sbr.rel (0) target = $region41
    $region40: #{_lambda_.1} parent=1 // pred_region
      %69 = dma.done [#allocation7], 512
    $region41: #{_lambda_.1} parent=1 // pred_fallthru
      _
    // Predicated region
    $region42: #{_lambda_.1} parent=1 // pred_check
      _
    $region43: #{_lambda_.1} parent=1 // pred_check_branch
      %71 = sbr.rel (0) target = $region45
    $region44: #{_lambda_.1} parent=1 // pred_region
      %73 = dma.done [#allocation7], 16
    $region45: #{_lambda_.1} parent=1 // pred_fallthru
      _
    %v74 = vld [vmem:[%s0] sm:$0xff]
    %v75 = vld [vmem:[%s1] sm:$0xff]
    %v76 = vld [vmem:[%s1 + $0x8] sm:$0xff]
    %v77 = vld [vmem:[#allocation3] sm:$0x1]
    %v79 = vperm.slane %v77, 0
    %vm81 = vcmask 130048
    %v83 = vsel %vm81, %v74, 0
    %85 = vmatpush.msra.mxu0 0.0
    %86 = vmatpush.msra.mxu0 0.0
    %87 = vmatpush.msra.mxu0 0.0
    %88 = vmatpush.msra.mxu0 0.0
    %89 = vmatpush.msra.mxu0 0.0
    %90 = vmatpush.msra.mxu0 0.0
    %91 = vmatpush.msra.mxu0 0.0
    %92 = vmatpush.msra.mxu0 0.0
    %93 = vmatpush.msra.mxu0 0.0
    %94 = vmatpush.msra.mxu0 0.0
    %95 = vmatpush.msra.mxu0 0.0
    %96 = vmatpush.msra.mxu0 0.0
    %97 = vmatpush.msra.mxu0 0.0
    %98 = vmatpush.msra.mxu0 0.0
    %99 = vmatpush.msra.mxu0 %v76
    %100 = vmatpush.msra.mxu0 %v75
    %101 = vmatmul.f32.gmra.mxu0 %v83
    %v102 = vpop.f32.mrf.mxu0
    %v103 = vadd.f32 %v79, %v102
    %104 = vdwg.mxu0
    %v105 = vmax.f32 %v103, 0.0
    %v106 = vld [vmem:[#allocation6] sm:$0xff]
    %v107 = vld [vmem:[#allocation6 + $0x8] sm:$0xff]
    %v108 = vld [vmem:[#allocation6 + $0x10] sm:$0xff]
    %v109 = vld [vmem:[#allocation6 + $0x18] sm:$0xff]
    %v110 = vld [vmem:[#allocation8] sm:$0x1]
    %v112 = vperm.slane %v110, 0
    %vm114 = vcmask 261120
    %v116 = vsel %vm114, %v105, 0
    %118 = vmatpush.msra.mxu0 0.0
    %119 = vmatpush.msra.mxu0 0.0
    %120 = vmatpush.msra.mxu0 0.0
    %121 = vmatpush.msra.mxu0 0.0
    %122 = vmatpush.msra.mxu0 0.0
    %123 = vmatpush.msra.mxu0 0.0
    %124 = vmatpush.msra.mxu0 0.0
    %125 = vmatpush.msra.mxu0 0.0
    %126 = vmatpush.msra.mxu0 0.0
    %127 = vmatpush.msra.mxu0 0.0
    %128 = vmatpush.msra.mxu0 0.0
    %129 = vmatpush.msra.mxu0 0.0
    %130 = vmatpush.msra.mxu0 %v109
    %131 = vmatpush.msra.mxu0 %v108
    %132 = vmatpush.msra.mxu0 %v107
    %133 = vmatpush.msra.mxu0 %v106
    %134 = vmatmul.f32.gmra.mxu0 %v116
    %v135 = vpop.f32.mrf.mxu0
    %v136 = vadd.f32 %v112, %v135
    %137 = vdwg.mxu0
    %vm138 = vcmask 31744
    %v139 = vsel %vm138, %v136, -inf
    %140 = vmax.xlane.f32.xlu0 %v139
    %v141 = vpop.xlane.xlu0 %140
    %v142 = vsub.f32 %v136, %v141
    %v143 = vmul.f32 %v142, 1.442695
    %v144 = vpow.pop %v143
    %v145 = vsel %vm138, %v144, 0.0
    %146 = vadd.xlane.f32.xlu0 %v145
    %v147 = vpop.xlane.xlu0 %146
    %v148 = vlog2.pop %v147
    %v149 = vmul.f32 %v148, 0.6931472
    %v150 = vadd.f32 %v141, %v149
    %v151 = vsub.f32 %v136, %v150
    %v152 = vlaneseq
    %v153 = vand.u32 %v152, 127
    %v154 = vld [vmem:[%s5] sm:$0xff]
    %155 = vset.pattern.permute.xlu0 0
    %156 = vperm.xlu0 %155, %v154
    %v157 = vpop.permute.xlu0 %156
    %vm158 = vcmp.eq.s32.totalorder %v153, %v157
    %v159 = vsel %vm158, 1, 0
    %v160 = vcvt.s32.f32 %v159
    %v161 = vmul.f32 %v151, %v160
    %v162 = vsel %vm138, %v161, 0.0
    %163 = vadd.xlane.f32.xlu0 %v162
    %v164 = vpop.xlane.xlu0 %163
    %v165 = vmul.f32 %v164, 1.442695
    %v166 = vpow.pop %v165
    %v167 = vsub.f32 0.0, %v164
    %v168 = vld [vmem:[%s6] sm:$0xff]
    %v169 = vmul.f32 %v167, %v168
    %vm170 = vcmask 7168
    %v171 = vsel %vm170, %v169, 0.0
    %172 = vadd.xlane.f32.xlu0 %v171
    %v173 = vpop.xlane.xlu0 %172
    %v174 = vrot.slane %v173, 4
    %v175 = vadd.f32 %v173, %v174
    %v176 = vrot.slane %v175, 2
    %v177 = vadd.f32 %v175, %v176
    %v178 = vrot.slane %v177, 1
    %v179 = vadd.f32 %v177, %v178
    %s180 = vtos %v179
    %v181 = vmul.f32 %v166, %v164
    %v182 = vsel %vm170, %v181, 0.0
    %183 = vadd.xlane.f32.xlu0 %v182
    %v184 = vpop.xlane.xlu0 %183
    %v185 = vrot.slane %v184, 4
    %v186 = vadd.f32 %v184, %v185
    %v187 = vrot.slane %v186, 2
    %v188 = vadd.f32 %v186, %v187
    %v189 = vrot.slane %v188, 1
    %v190 = vadd.f32 %v188, %v189
    %s191 = vtos %v190
    %s192 = sld [smem:[#allocation2]]
    %s193 = smul.f32 %s191, %s192
    %s194 = sadd.f32 %s180, %s193
    %s195 = scalar_lea.smem [#allocation9], 0
    %196 = sst [smem:[%s195]] %s194
    // Predicated region
    $region46: #{_lambda_.1} parent=1 // pred_check
      _
    $region47: #{_lambda_.1} parent=1 // pred_check_branch
      %198 = sbr.rel (0) target = $region49
    $region48: #{_lambda_.1} parent=1 // pred_region
      %200 = vsyncadd [#allocation5], 0
      %s202 = sshll.u32 %s8, 4
      %s203 = int_to_ptr.hbm [resolvable:$true] %s202
      %205 = dma.smem_to_hbm [#allocation9], 16, %s203, [#allocation5]
    $region49: #{_lambda_.1} parent=1 // pred_fallthru
      _
    // Predicated region
    $region50: #{_lambda_.1} parent=1 // pred_check
      _
    $region51: #{_lambda_.1} parent=1 // pred_check_branch
      %207 = sbr.rel (0) target = $region53
    $region52: #{_lambda_.1} parent=1 // pred_region
      %209 = dma.done [#allocation5], 16
    $region53: #{_lambda_.1} parent=1 // pred_fallthru
      _
    %210 = sfence
    %211 = vsyncpa [#allocation4], 1
    %212 = vsyncpa [#allocation7], 1
    %213 = vsyncpa [#allocation5], 1

</llo_original>
